<compile_context>
chip_gen: v5e
topology: v5e:2x2
jax: 0.10.0
libtpu: 0.0.40
codegen_flags: <defaults>
</compile_context>

<pallas_src>
import functools

import jax
import jax.numpy as jnp
from jax import lax
from jax.experimental import pallas as pl
from jax.experimental.pallas import tpu as pltpu

NEG_SLOPE = 0.2       # LeakyReLU negative slope used by GATConv
NEG_INF = -1e30       # mask value for non-edges


# ---------------------------------------------------------------------------
# Kernel 1: hoisted, widened feature projection  h_all = x @ W  -> [N, H*C]
# ---------------------------------------------------------------------------
def _proj_kernel(x_ref, w_ref, o_ref):
    o_ref[...] = jnp.dot(x_ref[...], w_ref[...],
                         preferred_element_type=jnp.float32)


# ---------------------------------------------------------------------------
# Kernel 2: masked online-softmax attention + aggregation over (i, j) tiles.
# ---------------------------------------------------------------------------
def _gat_attn_kernel(hi_ref, hj_ref, att_ref, adj_ref, *rest,
                     heads, out_ch, has_dp):
    if has_dp:
        dp_ref, out_ref, m_sc, l_sc, acc_sc = rest
    else:
        dp_ref = None
        out_ref, m_sc, l_sc, acc_sc = rest

    H, C = heads, out_ch
    j = pl.program_id(1)
    nj = pl.num_programs(1)

    @pl.when(j == 0)
    def _():
        m_sc[...] = jnp.full(m_sc.shape, NEG_INF, dtype=m_sc.dtype)
        l_sc[...] = jnp.zeros(l_sc.shape, dtype=l_sc.dtype)
        acc_sc[...] = jnp.zeros(acc_sc.shape, dtype=acc_sc.dtype)

    hi = hi_ref[...]                                   # [TI, H*C] target rows
    hj = hj_ref[...]                                   # [TJ, H*C] source cols
    edge = adj_ref[...].astype(jnp.int32) > 0          # [TI, TJ] bool

    for h in range(H):                                 # static unroll over heads
        c0, c1 = h * C, (h + 1) * C
        hi_h = hi[:, c0:c1]                            # [TI, C]
        hj_h = hj[:, c0:c1]                            # [TJ, C]
        att_l = att_ref[0:1, c0:c1]                    # [1, C]
        att_r = att_ref[1:2, c0:c1]                    # [1, C]

        # a_dst as a column [TI,1]; a_src produced directly in ROW layout
        # [1,TJ] via dot_general (avoids the [TJ,1]->[1,TJ] XLU relayout).
        a_dst = jnp.sum(hi_h * att_l, axis=1, keepdims=True)
        a_src = lax.dot_general(att_r, hj_h, (((1,), (1,)), ((), ())),
                                preferred_element_type=jnp.float32)

        e = a_dst + a_src                              # [TI, TJ]
        e = jnp.where(e > 0, e, NEG_SLOPE * e)         # LeakyReLU
        masked = jnp.where(edge, e, NEG_INF)

        m_prev = m_sc[h]                               # [TI, 1]
        m_new = jnp.maximum(m_prev, jnp.max(masked, axis=1, keepdims=True))
        scale = jnp.exp(m_prev - m_new)
        # NOTE: unlike the untiled kernel, masking p here is NOT redundant: a
        # (i, j) tile in which a row has no edges would give masked == m_new
        # and exp() == 1 for every entry without this guard.
        p = jnp.where(edge, jnp.exp(masked - m_new), 0.0)      # [TI, TJ]

        l_sc[h] = scale * l_sc[h] + jnp.sum(p, axis=1, keepdims=True)
        # Dropout is applied to alpha AFTER normalization in refGATConv; with an
        # online softmax that is: acc += (p * dp) @ h_j while l += sum(p).
        p_eff = p * dp_ref[h] if has_dp else p
        acc_sc[h] = scale * acc_sc[h] + jnp.dot(
            p_eff, hj_h, preferred_element_type=jnp.float32)
        m_sc[h] = m_new

    @pl.when(j == nj - 1)
    def _():
        for h in range(H):
            c0, c1 = h * C, (h + 1) * C
            bias_h = att_ref[2:3, c0:c1]               # [1, C]
            out_ref[:, c0:c1] = acc_sc[h] / l_sc[h] + bias_h


# ---------------------------------------------------------------------------
# Host-side glue
# ---------------------------------------------------------------------------
def _pick_tile(n, cap, align):
    """Largest tile <= cap that divides n and is a multiple of `align`.
    Falls back to a single full-size tile (full-array dims are layout-exempt)."""
    if n <= cap:
        return n
    t = (cap // align) * align
    while t >= align:
        if n % t == 0:
            return t
        t -= align
    return n


def _tpu_vmem_bytes():
    vmem = 64 * 1024 * 1024   # conservative default (v7x per-TC VMEM)
    try:
        vmem = int(getattr(pltpu.get_tpu_info(), "vmem_capacity_bytes", vmem))
    except Exception:
        pass
    return vmem


def gat_forward(x, edge_index, params, heads, out_channels,
                dp_mask=None, dp_mask_self=None):
    """CastratedGAT.forward: one GAT conv, concat heads -> [N, heads*out_channels]."""
    N, F = x.shape
    H, C = heads, out_channels
    HC = H * C

    vmem_cap = _tpu_vmem_bytes()
    # Generation-aware tile caps: 64-MiB VMEM parts (v7x) get smaller tiles.
    if vmem_cap >= 96 * 1024 * 1024:
        ti_cap, tj_cap = 512, 1024
    else:
        ti_cap, tj_cap = 256, 512
    TI = _pick_tile(N, ti_cap, 32)     # 32-aligned keeps int8 adj tiles native
    TJ = _pick_tile(N, tj_cap, 128)    # lane-aligned neighbor tiles

    # ---- glue: dense adjacency as int8 (only `adj != 0` is used in-kernel).
    # flow='target_to_source': row i gathers from col j; self-loops included.
    # TODO(synk): for large sparse graphs replace the O(N^2) densification with
    # CSR neighbor lists fed via pltpu.PrefetchScalarGridSpec + gathered h rows.
    adj = jnp.zeros((N, N), jnp.int8)
    adj = adj.at[edge_index[0], edge_index[1]].set(1)
    diag = jnp.arange(N)
    adj = adj.at[diag, diag].set(1)

    # ---- glue: pack att_l / att_r / bias into one [3, H*C] operand.
    att_packed = jnp.stack([
        params["att_l"].reshape(HC).astype(jnp.float32),
        params["att_r"].reshape(HC).astype(jnp.float32),
        params["bias"].reshape(HC).astype(jnp.float32),
    ])

    # ---- kernel 1: projection (one wide matmul, tiled over rows of x)
    TIP = _pick_tile(N, 512, 8)
    proj_vmem = int(min(0.9 * vmem_cap,
                        max(32 * 1024 * 1024,
                            2 * 4 * (2 * TIP * F + F * HC + 2 * TIP * HC))))
    h_all = pl.pallas_call(
        _proj_kernel,
        out_shape=jax.ShapeDtypeStruct((N, HC), jnp.float32),
        grid=(N // TIP,),
        in_specs=[
            pl.BlockSpec((TIP, F), lambda i: (i, 0)),
            pl.BlockSpec((F, HC), lambda i: (0, 0)),
        ],
        out_specs=pl.BlockSpec((TIP, HC), lambda i: (i, 0)),
        compiler_params=pltpu.CompilerParams(
            dimension_semantics=("parallel",),
            vmem_limit_bytes=proj_vmem),
    )(x.astype(jnp.float32), params["W"].astype(jnp.float32))

    # ---- kernel 2: masked softmax + aggregation
    has_dp = (dp_mask is not None) or (dp_mask_self is not None)
    in_specs = [
        pl.BlockSpec((TI, HC), lambda i, j: (i, 0)),    # projected feats, target rows
        pl.BlockSpec((TJ, HC), lambda i, j: (j, 0)),    # projected feats, source cols
        pl.BlockSpec((3, HC), lambda i, j: (0, 0)),     # packed att_l/att_r/bias
        pl.BlockSpec((TI, TJ), lambda i, j: (i, j)),    # adjacency tile (int8)
    ]
    operands = [h_all, h_all, att_packed, adj]
    if has_dp:
        # ---- glue: fold edge / self-loop dropout masks into dense [H, N, N].
        # TODO(synk): training-time mask *generation* (F.dropout p=0.6) is not
        # done in-kernel; masks are inputs (the eval path omits them entirely).
        dp = jnp.ones((H, N, N), jnp.float32)
        if dp_mask is not None:                          # [E, H] per-edge mask
            dp = dp.at[:, edge_index[0], edge_index[1]].set(dp_mask.T)
        if dp_mask_self is not None:                     # [N, H] self-loop mask
            dp = dp.at[:, diag, diag].set(dp_mask_self.T)
        in_specs.append(pl.BlockSpec((H, TI, TJ), lambda i, j: (0, i, j)))
        operands.append(dp)

    attn_bytes = (2 * TI * HC * 4 + 2 * TJ * HC * 4      # hi / hj (double buffered)
                  + 2 * TI * TJ                           # adj int8
                  + 2 * TI * HC * 4                       # output block
                  + (2 * H * TI + H * TI * C) * 4         # m / l / acc scratch
                  + 8 * TI * TJ * 4)                      # intermediates headroom
    if has_dp:
        attn_bytes += 2 * H * TI * TJ * 4
    attn_vmem = int(min(0.9 * vmem_cap, max(32 * 1024 * 1024, 2 * attn_bytes)))

    kernel = functools.partial(_gat_attn_kernel, heads=H, out_ch=C, has_dp=has_dp)
    out = pl.pallas_call(
        kernel,
        out_shape=jax.ShapeDtypeStruct((N, HC), jnp.float32),
        grid=(N // TI, N // TJ),
        in_specs=in_specs,
        out_specs=pl.BlockSpec((TI, HC), lambda i, j: (i, 0)),
        scratch_shapes=[
            pltpu.VMEM((H, TI, 1), jnp.float32),   # running max per head
            pltpu.VMEM((H, TI, 1), jnp.float32),   # running denom per head
            pltpu.VMEM((H, TI, C), jnp.float32),   # running weighted sum per head
        ],
        compiler_params=pltpu.CompilerParams(
            dimension_semantics=("parallel", "arbitrary"),
            vmem_limit_bytes=attn_vmem),
    )(*operands)
    return out


def init_gat_params(key, num_features, heads, out_channels):
    """Deterministic parameter init matching refGATConv shapes."""
    k_w, k_l, k_r = jax.random.split(key, 3)
    glorot_w = (6.0 / (num_features + heads * out_channels)) ** 0.5
    glorot_a = (6.0 / (out_channels + 1)) ** 0.5
    return {
        "W": jax.random.uniform(k_w, (num_features, heads * out_channels),
                                jnp.float32, -glorot_w, glorot_w),
        "att_l": jax.random.uniform(k_l, (heads, out_channels),
                                    jnp.float32, -glorot_a, glorot_a),
        "att_r": jax.random.uniform(k_r, (heads, out_channels),
                                    jnp.float32, -glorot_a, glorot_a),
        "bias": jnp.zeros((heads * out_channels,), jnp.float32),
    }


if __name__ == "__main__":
    key = jax.random.PRNGKey(0)
    k_x, k_src, k_dst, k_param, k_dp, k_dps = jax.random.split(key, 6)

    # Small shapes consistent with the module: num_features=16, hidden=32, heads=4.
    N, F_in = 32, 16
    hidden, heads = 32, 4
    C = hidden // heads

    x = jax.random.normal(k_x, (N, F_in), jnp.float32)
    E = 64
    src = jax.random.randint(k_src, (E,), 0, N)
    dst = jax.random.randint(k_dst, (E,), 0, N)
    edge_index = jnp.stack([src, dst])               # [2, E]

    params = init_gat_params(k_param, F_in, heads, C)

    # Eval path (no attention dropout -> dp input omitted from the kernel).
    out = gat_forward(x, edge_index, params, heads, C)
    out = jax.block_until_ready(out)
    assert out.shape == (N, heads * C), out.shape
    assert bool(jnp.all(jnp.isfinite(out)))

    # Training-style path: precomputed attention-dropout masks (p=0.6).
    keep = 0.4
    dp_mask = (jax.random.bernoulli(k_dp, keep, (E, heads)) / keep).astype(jnp.float32)
    dp_mask_self = (jax.random.bernoulli(k_dps, keep, (N, heads)) / keep).astype(jnp.float32)
    out_dp = gat_forward(x, edge_index, params, heads, C,
                         dp_mask=dp_mask, dp_mask_self=dp_mask_self)
    out_dp = jax.block_until_ready(out_dp)
    assert out_dp.shape == (N, heads * C), out_dp.shape
    assert bool(jnp.all(jnp.isfinite(out_dp)))

    print("KERNEL_OK")
</pallas_src>

<mosaic_0001>
module attributes {stable_mosaic.version = 11 : i64} {
  func.func @_proj_kernel(%arg0: i32, %arg1: memref<32x16xf32, #tpu.memory_space<vmem>>, %arg2: memref<16x32xf32, #tpu.memory_space<vmem>>, %arg3: memref<32x32xf32, #tpu.memory_space<vmem>>) attributes {dimension_semantics = [#tpu.dimension_semantics<parallel>], iteration_bounds = array<i64: 1>, scalar_prefetch = 0 : i64, scratch_operands = 0 : i64, tpu.core_type = #tpu.core_type<tc>, window_params = [{transform_indices = @transform_0, window_bounds = array<i64: 32, 16>}, {pipeline_mode = #tpu.pipeline_mode<synchronous>, transform_indices = @transform_1, window_bounds = array<i64: 16, 32>}, {transform_indices = @transform_2, window_bounds = array<i64: 32, 32>}]} {
    %c0 = arith.constant 0 : index
    %c0_0 = arith.constant 0 : index
    %0 = vector.load %arg1[%c0, %c0_0] : memref<32x16xf32, #tpu.memory_space<vmem>>, vector<32x16xf32>
    %c0_1 = arith.constant 0 : index
    %c0_2 = arith.constant 0 : index
    %1 = vector.load %arg2[%c0_1, %c0_2] : memref<16x32xf32, #tpu.memory_space<vmem>>, vector<16x32xf32>
    %cst = arith.constant dense<0.000000e+00> : vector<32x32xf32>
    %2 = tpu.matmul %0, %1, %cst {dimension_numbers = #tpu.dot_dimension_numbers<[1], [0], [0], [1], [0, 0, 1, 1], [], []>} : vector<32x16xf32>, vector<16x32xf32>, vector<32x32xf32> -> vector<32x32xf32>
    %c0_3 = arith.constant 0 : index
    %c0_4 = arith.constant 0 : index
    %3 = vector.load %arg3[%c0_3, %c0_4] : memref<32x32xf32, #tpu.memory_space<vmem>>, vector<32x32xf32>
    tpu.vector_store %arg3[%c0_3, %c0_4], %2 {strides = array<i32>} : memref<32x32xf32, #tpu.memory_space<vmem>>, vector<32x32xf32>,
    return
  }
  func.func @transform_0(%arg0: i32) -> (i32, i32) {
    %c0_i32 = arith.constant 0 : i32
    %c0_i32_0 = arith.constant 0 : i32
    return %arg0, %c0_i32 : i32, i32
  }
  func.func @transform_1(%arg0: i32) -> (i32, i32) {
    %c0_i32 = arith.constant 0 : i32
    %c0_i32_0 = arith.constant 0 : i32
    %c0_i32_1 = arith.constant 0 : i32
    return %c0_i32, %c0_i32_0 : i32, i32
  }
  func.func @transform_2(%arg0: i32) -> (i32, i32) {
    %c0_i32 = arith.constant 0 : i32
    %c0_i32_0 = arith.constant 0 : i32
    return %arg0, %c0_i32 : i32, i32
  }
}

</mosaic_0001>

<llo_original>
// kernel: tpu_custom_call.1
$region0: #{tpu_custom_call.1}
  #allocation0 [shape = 'u32[]', space=smem, size = 0x4, offset = 0x4, fixed_abs, tag = 'smem constant byte address 0x4 - core index']
  #allocation1 [shape = 'u32[72,128]{1,0:T(1,128)}', space=vmem, size = 0x9000, scoped, tag = 'internal scratch']
  %s0 = inlined_call_operand.vmem [shape: f32[32,16], index: 0, kind: input, shape index: {}]
  %s1 = inlined_call_operand.vmem [shape: f32[16,32], index: 1, kind: input, shape index: {}]
  %s2 = inlined_call_operand.hbm [shape: f32[32,32], index: 2, kind: output, shape index: {}]
  %s3 = sld [smem:[#allocation0]]
  $region18: #{tpu_custom_call.1} parent=0
    _
  %s5 = ssub.s32 1, %s3
  %s6 = scalar_select 0, %s5, %s3
  $region1: #{tpu_custom_call.1} parent=0
    #allocation2 [shape = 'u8[16384]{0}', space=vmem, size = 0x4000, scoped, tag = 'output window, operand 0, single buffered']
    #allocation3 [shape = 's32[1]{0}', space=sflag, size = 0x4, scoped, tag = 'scoped memory for tpu_custom_call.1']
    %7 = vsyncpa [#allocation3], 0
    // Predicated region
    $region2: #{tpu_custom_call.1} parent=1 // pred_check
      _
    $region3: #{tpu_custom_call.1} parent=1 // pred_check_branch
      %9 = sbr.rel (0) target = $region5
    $region4: #{tpu_custom_call.1} parent=1 // pred_region
      _
    $region5: #{tpu_custom_call.1} parent=1 // pred_fallthru
      _
    // Predicated region
    $region6: #{tpu_custom_call.1} parent=1 // pred_check
      _
    $region7: #{tpu_custom_call.1} parent=1 // pred_check_branch
      %11 = sbr.rel (0) target = $region9
    $region8: #{tpu_custom_call.1} parent=1 // pred_region
      _
    $region9: #{tpu_custom_call.1} parent=1 // pred_fallthru
      _
    %v12 = vld [vmem:[%s0] sm:$0xff]
    %v13 = vld [vmem:[%s0 + $0x8] sm:$0xff]
    %v14 = vld [vmem:[%s0 + $0x10] sm:$0xff]
    %v15 = vld [vmem:[%s0 + $0x18] sm:$0xff]
    %v16 = vld [vmem:[%s1] sm:$0xff]
    %v17 = vld [vmem:[%s1 + $0x8] sm:$0xff]
    %vm18 = vcmask 130048
    %v20 = vsel %vm18, %v12, 0
    %v23 = vsel %vm18, %v13, 0
    %v26 = vsel %vm18, %v14, 0
    %v29 = vsel %vm18, %v15, 0
    %31 = vmatpush.msra.mxu0 0.0
    %32 = vmatpush.msra.mxu0 0.0
    %33 = vmatpush.msra.mxu0 0.0
    %34 = vmatpush.msra.mxu0 0.0
    %35 = vmatpush.msra.mxu0 0.0
    %36 = vmatpush.msra.mxu0 0.0
    %37 = vmatpush.msra.mxu0 0.0
    %38 = vmatpush.msra.mxu0 0.0
    %39 = vmatpush.msra.mxu0 0.0
    %40 = vmatpush.msra.mxu0 0.0
    %41 = vmatpush.msra.mxu0 0.0
    %42 = vmatpush.msra.mxu0 0.0
    %43 = vmatpush.msra.mxu0 0.0
    %44 = vmatpush.msra.mxu0 0.0
    %45 = vmatpush.msra.mxu0 %v17
    %46 = vmatpush.msra.mxu0 %v16
    %47 = vmatmul.f32.gmra.mxu0 %v20
    %v48 = vpop.f32.mrf.mxu0
    %v49 = vadd.f32 0.0, %v48
    %50 = vmatmul.f32.gmra.mxu0 %v23
    %v51 = vpop.f32.mrf.mxu0
    %v52 = vadd.f32 0.0, %v51
    %53 = vmatmul.f32.gmra.mxu0 %v26
    %v54 = vpop.f32.mrf.mxu0
    %v55 = vadd.f32 0.0, %v54
    %56 = vmatmul.f32.gmra.mxu0 %v29
    %v57 = vpop.f32.mrf.mxu0
    %v58 = vadd.f32 0.0, %v57
    %59 = vdwg.mxu0
    %vm60 = vcmask 261120
    %61 = vst.msk [vmem:[#allocation2] sm:$0xff] %vm60, %v49
    %62 = vst.msk [vmem:[#allocation2 + $0x8] sm:$0xff] %vm60, %v52
    %63 = vst.msk [vmem:[#allocation2 + $0x10] sm:$0xff] %vm60, %v55
    %64 = vst.msk [vmem:[#allocation2 + $0x18] sm:$0xff] %vm60, %v58
    // Predicated region
    $region10: #{tpu_custom_call.1} parent=1 // pred_check
      _
    $region11: #{tpu_custom_call.1} parent=1 // pred_check_branch
      %66 = sbr.rel (0) target = $region13
    $region12: #{tpu_custom_call.1} parent=1 // pred_region
      %68 = vsyncadd [#allocation3], 0
      %s69 = sshll.u32 [#allocation2], 4
      %s70 = int_to_ptr.vmem [resolvable:$true] %s69
      %s71 = sshll.u32 %s2, 4
      %s72 = int_to_ptr.hbm [resolvable:$true] %s71
      %77 = dma.vmem_to_hbm [thread:$0]  %s70, 512, %s72, [#allocation3], 128, 128, 8
    $region13: #{tpu_custom_call.1} parent=1 // pred_fallthru
      _
    // Predicated region
    $region14: #{tpu_custom_call.1} parent=1 // pred_check
      _
    $region15: #{tpu_custom_call.1} parent=1 // pred_check_branch
      %79 = sbr.rel (0) target = $region17
    $region16: #{tpu_custom_call.1} parent=1 // pred_region
      %81 = dma.done [#allocation3], 512
    $region17: #{tpu_custom_call.1} parent=1 // pred_fallthru
      _
    %82 = vsyncpa [#allocation3], 1

</llo_original>
